<compile_context>
chip_gen: v6e
topology: v6e:2x2x1
jax: 0.10.0
libtpu: 0.0.40
codegen_flags: <defaults>
</compile_context>

<pallas_src>
import math

import jax
import jax.numpy as jnp
from jax.experimental import pallas as pl
from jax.experimental.pallas import tpu as pltpu

EPS = 1e-5
EXPANSION = 4
ROW_TILE = 256  # target rows per grid step (multiple of 8)


# ----------------------------- Pallas kernels ------------------------------

def pre1_kernel(x_ref, s1_ref, b1_ref, w1_ref, s2_ref, b2_ref, o_ref):
    """relu(bn2( relu(bn1(x)) @ w1 )) for one row tile.
    BN/ReLU math in f32, matmul operands bf16, f32 accumulation, bf16 out."""
    a = jnp.maximum(x_ref[...] * s1_ref[...] + b1_ref[...], 0.0)
    y = jnp.dot(a.astype(jnp.bfloat16), w1_ref[...],
                preferred_element_type=jnp.float32)
    o_ref[...] = jnp.maximum(y * s2_ref[...] + b2_ref[...], 0.0).astype(o_ref.dtype)


def fused_tail_proj_kernel(p_ref, xs_ref, w2_ref, s3_ref, b3_ref, w3_ref,
                           ss_ref, bs_ref, ws_ref, o_ref):
    """One row tile of:
         relu(bn3(patches @ w2)) @ w3  +  relu(bn_s(xs)) @ ws
    i.e. 3x3 conv + BN3+ReLU + final 1x1 conv + fused projection shortcut."""
    h = jnp.dot(p_ref[...], w2_ref[...], preferred_element_type=jnp.float32)
    h = jnp.maximum(h * s3_ref[...] + b3_ref[...], 0.0)
    out = jnp.dot(h.astype(jnp.bfloat16), w3_ref[...],
                  preferred_element_type=jnp.float32)
    sc = jnp.maximum(xs_ref[...] * ss_ref[...] + bs_ref[...], 0.0)
    out += jnp.dot(sc.astype(jnp.bfloat16), ws_ref[...],
                   preferred_element_type=jnp.float32)
    o_ref[...] = out


def fused_tail_id_kernel(p_ref, r_ref, w2_ref, s3_ref, b3_ref, w3_ref, o_ref):
    """One row tile of:  relu(bn3(patches @ w2)) @ w3 + residual (identity)."""
    h = jnp.dot(p_ref[...], w2_ref[...], preferred_element_type=jnp.float32)
    h = jnp.maximum(h * s3_ref[...] + b3_ref[...], 0.0)
    o_ref[...] = jnp.dot(h.astype(jnp.bfloat16), w3_ref[...],
                         preferred_element_type=jnp.float32) + r_ref[...]


# ------------------------------ spec helpers --------------------------------

def _row_spec(tm, cols):
    return pl.BlockSpec((tm, cols), lambda i: (i, 0))


def _full_spec(shape):
    nd = len(shape)
    return pl.BlockSpec(shape, lambda i, _nd=nd: (0,) * _nd)


def _row_tile(m, target=ROW_TILE):
    if m <= target:
        return m
    return target - target % 8 if target % 8 else target


def _params(blocks):
    """CompilerParams: row axis parallel (megacore sharding on v7x) + a VMEM
    limit sized for the chosen blocks (x2 double buffering, x2 margin),
    clamped so it is valid on v5e/v6e/v7x."""
    bb = sum(math.prod(s) * jnp.dtype(d).itemsize for s, d in blocks)
    limit = int(min(max(4 * bb, 4 << 20), 32 << 20))
    return pltpu.CompilerParams(dimension_semantics=("parallel",),
                                vmem_limit_bytes=limit)


# ------------------------------ kernel wrappers ------------------------------

def pre1(x2d, s1, b1, w1_bf, s2, b2):
    """BN1+ReLU -> 1x1 conv -> BN2+ReLU, row tiled; returns (M, ch) bf16."""
    M, cin = x2d.shape
    ch = w1_bf.shape[1]
    tm = _row_tile(M)
    blocks = [((tm, cin), jnp.float32), ((1, cin), jnp.float32),
              ((1, cin), jnp.float32), ((cin, ch), jnp.bfloat16),
              ((1, ch), jnp.float32), ((1, ch), jnp.float32),
              ((tm, ch), jnp.bfloat16)]
    return pl.pallas_call(
        pre1_kernel,
        out_shape=jax.ShapeDtypeStruct((M, ch), jnp.bfloat16),
        grid=(pl.cdiv(M, tm),),
        in_specs=[_row_spec(tm, cin), _full_spec((1, cin)), _full_spec((1, cin)),
                  _full_spec((cin, ch)), _full_spec((1, ch)), _full_spec((1, ch))],
        out_specs=_row_spec(tm, ch),
        compiler_params=_params(blocks),
    )(x2d, s1.reshape(1, cin), b1.reshape(1, cin), w1_bf,
      s2.reshape(1, ch), b2.reshape(1, ch))


def fused_tail(patches, shortcut_in, w2_bf, s3, b3, w3_bf, proj=None):
    """Fused 3x3 conv (+BN3+ReLU) + final 1x1 conv + residual, row tiled.

    patches:     (M, 9*ch) bf16 im2col of the second pre-activation.
    If proj is None:  shortcut_in is the (M, cout) f32 identity residual.
    Else proj = (ss, bs, ws_bf) and shortcut_in is the strided (M, Cin) f32
    input that feeds the projection shortcut BN+ReLU+1x1 conv.
    """
    M, K = patches.shape
    ch = w2_bf.shape[1]
    cout = w3_bf.shape[1]
    tm = _row_tile(M)
    common_blocks = [((tm, K), jnp.bfloat16), ((K, ch), jnp.bfloat16),
                     ((1, ch), jnp.float32), ((1, ch), jnp.float32),
                     ((ch, cout), jnp.bfloat16), ((tm, cout), jnp.float32)]

    if proj is None:
        blocks = common_blocks + [((tm, cout), jnp.float32)]
        return pl.pallas_call(
            fused_tail_id_kernel,
            out_shape=jax.ShapeDtypeStruct((M, cout), jnp.float32),
            grid=(pl.cdiv(M, tm),),
            in_specs=[_row_spec(tm, K), _row_spec(tm, cout),
                      _full_spec((K, ch)), _full_spec((1, ch)),
                      _full_spec((1, ch)), _full_spec((ch, cout))],
            out_specs=_row_spec(tm, cout),
            compiler_params=_params(blocks),
        )(patches, shortcut_in, w2_bf,
          s3.reshape(1, ch), b3.reshape(1, ch), w3_bf)

    ss, bs, ws_bf = proj
    cin = shortcut_in.shape[1]
    blocks = common_blocks + [((tm, cin), jnp.float32), ((1, cin), jnp.float32),
                              ((1, cin), jnp.float32), ((cin, cout), jnp.bfloat16)]
    return pl.pallas_call(
        fused_tail_proj_kernel,
        out_shape=jax.ShapeDtypeStruct((M, cout), jnp.float32),
        grid=(pl.cdiv(M, tm),),
        in_specs=[_row_spec(tm, K), _row_spec(tm, cin),
                  _full_spec((K, ch)), _full_spec((1, ch)), _full_spec((1, ch)),
                  _full_spec((ch, cout)), _full_spec((1, cin)),
                  _full_spec((1, cin)), _full_spec((cin, cout))],
        out_specs=_row_spec(tm, cout),
        compiler_params=_params(blocks),
    )(patches, shortcut_in, w2_bf, s3.reshape(1, ch), b3.reshape(1, ch),
      w3_bf, ss.reshape(1, cin), bs.reshape(1, cin), ws_bf)


# ------------------------------ wrapper glue ---------------------------------

def _im2col_3x3(a, stride):
    """(N,H,W,C) -> ((N*Ho*Wo, 9*C), Ho, Wo), pad=1, tap-major (dy,dx) order."""
    N, H, W, C = a.shape
    Ho = (H - 1) // stride + 1
    Wo = (W - 1) // stride + 1
    ap = jnp.pad(a, ((0, 0), (1, 1), (1, 1), (0, 0)))
    cols = [ap[:, dy:dy + stride * (Ho - 1) + 1:stride,
               dx:dx + stride * (Wo - 1) + 1:stride, :]
            for dy in range(3) for dx in range(3)]
    return jnp.concatenate(cols, axis=-1).reshape(N * Ho * Wo, 9 * C), Ho, Wo


def fold_bn(p):
    scale = p["gamma"] * jax.lax.rsqrt(p["var"] + EPS)
    shift = p["beta"] - p["mean"] * scale
    return scale, shift


def bottleneck_forward_pallas(x_nchw, params, stride):
    x = jnp.transpose(x_nchw, (0, 2, 3, 1)).astype(jnp.float32)   # NHWC
    N, H, W, cin = x.shape
    ch = params["w1"].shape[0]
    cout = ch * EXPANSION

    s1, b1 = fold_bn(params["bn1"])
    s2, b2 = fold_bn(params["bn2"])
    s3, b3 = fold_bn(params["bn3"])
    w1 = params["w1"].reshape(ch, cin).T.astype(jnp.bfloat16)          # (cin, ch)
    w2 = jnp.transpose(params["w2"], (2, 3, 1, 0)).reshape(9 * ch, ch) \
            .astype(jnp.bfloat16)                                       # (9*ch, ch)
    w3 = params["w3"].reshape(cout, ch).T.astype(jnp.bfloat16)         # (ch, cout)

    # K1: BN1+ReLU -> 1x1 conv -> BN2+ReLU (row tiled, bf16 output)
    a2 = pre1(x.reshape(-1, cin), s1, b1, w1, s2, b2).reshape(N, H, W, ch)

    # im2col for the 3x3 conv (single (M, 9*ch) bf16 buffer; XLA glue)
    patches, Ho, Wo = _im2col_3x3(a2, stride)

    if "w_s" in params:
        ss, bs = fold_bn(params["bn_s"])
        ws = params["w_s"].reshape(cout, cin).T.astype(jnp.bfloat16)   # (cin, cout)
        xs = x[:, ::stride, ::stride, :].reshape(-1, cin)
        out = fused_tail(patches, xs, w2, s3, b3, w3, proj=(ss, bs, ws))
    else:
        assert stride == 1 and cin == cout, "identity shortcut requires s=1, Cin==4*ch"
        out = fused_tail(patches, x.reshape(-1, cout), w2, s3, b3, w3)

    return jnp.transpose(out.reshape(N, Ho, Wo, cout), (0, 3, 1, 2))   # NCHW


# --------------------------- pure-JAX reference ------------------------------

def ref_forward(x, params, stride):
    def bn_relu(x, p):
        inv = jax.lax.rsqrt(p["var"] + EPS)
        y = (x - p["mean"][None, :, None, None]) * inv[None, :, None, None]
        y = y * p["gamma"][None, :, None, None] + p["beta"][None, :, None, None]
        return jnp.maximum(y, 0.0)

    def conv(x, w, s, pad):
        return jax.lax.conv_general_dilated(
            x, w, (s, s), [(pad, pad), (pad, pad)],
            dimension_numbers=("NCHW", "OIHW", "NCHW"))

    if "w_s" in params:
        shortcut = conv(bn_relu(x, params["bn_s"]), params["w_s"], stride, 0)
    else:
        shortcut = x
    out = conv(bn_relu(x, params["bn1"]), params["w1"], 1, 0)
    out = conv(bn_relu(out, params["bn2"]), params["w2"], stride, 1)
    out = conv(bn_relu(out, params["bn3"]), params["w3"], 1, 0)
    return out + shortcut


# --------------------------------- main --------------------------------------

def make_bn(k, c):
    k1, k2, k3, k4 = jax.random.split(k, 4)
    return dict(
        gamma=jax.random.uniform(k1, (c,), jnp.float32, 0.5, 1.5),
        beta=0.1 * jax.random.normal(k2, (c,), jnp.float32),
        mean=0.1 * jax.random.normal(k3, (c,), jnp.float32),
        var=jax.random.uniform(k4, (c,), jnp.float32, 0.5, 1.5),
    )


def make_params(key, in_channels, channels, stride):
    keys = jax.random.split(key, 8)
    cout = channels * EXPANSION
    p = {
        "bn1": make_bn(keys[0], in_channels),
        "w1": 0.1 * jax.random.normal(keys[1], (channels, in_channels, 1, 1),
                                      jnp.float32),
        "bn2": make_bn(keys[2], channels),
        "w2": 0.1 * jax.random.normal(keys[3], (channels, channels, 3, 3),
                                      jnp.float32),
        "bn3": make_bn(keys[4], channels),
        "w3": 0.1 * jax.random.normal(keys[5], (cout, channels, 1, 1),
                                      jnp.float32),
    }
    if not (stride == 1 and in_channels == cout):
        p["bn_s"] = make_bn(keys[6], in_channels)
        p["w_s"] = 0.1 * jax.random.normal(keys[7], (cout, in_channels, 1, 1),
                                           jnp.float32)
    return p


if __name__ == "__main__":
    key = jax.random.PRNGKey(0)
    cases = [
        # (N, in_channels, H, W, channels, stride)
        (2, 8, 16, 16, 4, 2),    # projection shortcut (stride 2)
        (2, 16, 16, 16, 4, 1),   # identity shortcut (stride 1, Cin == 4*ch)
    ]
    for i, (N, cin, H, W, ch, stride) in enumerate(cases):
        kp, kx = jax.random.split(jax.random.fold_in(key, i))
        params = make_params(kp, cin, ch, stride)
        x = jax.random.normal(kx, (N, cin, H, W), jnp.float32)

        out = jax.block_until_ready(bottleneck_forward_pallas(x, params, stride))
        ref = ref_forward(x, params, stride)
        assert out.shape == ref.shape, (out.shape, ref.shape)
        err = float(jnp.max(jnp.abs(out - ref)))
        # bf16 MXU operands with f32 accumulation -> ~1e-2 level agreement
        assert jnp.allclose(out, ref, atol=2e-2, rtol=2e-2), err
    print("KERNEL_OK")
</pallas_src>

<mosaic_0001>
module attributes {stable_mosaic.version = 11 : i64} {
  func.func @pre1_kernel(%arg0: i32, %arg1: memref<256x8xf32, #tpu.memory_space<vmem>>, %arg2: memref<1x8xf32, #tpu.memory_space<vmem>>, %arg3: memref<1x8xf32, #tpu.memory_space<vmem>>, %arg4: memref<8x4xbf16, #tpu.memory_space<vmem>>, %arg5: memref<1x4xf32, #tpu.memory_space<vmem>>, %arg6: memref<1x4xf32, #tpu.memory_space<vmem>>, %arg7: memref<256x4xbf16, #tpu.memory_space<vmem>>) attributes {dimension_semantics = [#tpu.dimension_semantics<parallel>], iteration_bounds = array<i64: 2>, scalar_prefetch = 0 : i64, scratch_operands = 0 : i64, tpu.core_type = #tpu.core_type<tc>, window_params = [{transform_indices = @transform_0, window_bounds = array<i64: 256, 8>}, {pipeline_mode = #tpu.pipeline_mode<synchronous>, transform_indices = @transform_1, window_bounds = array<i64: 1, 8>}, {pipeline_mode = #tpu.pipeline_mode<synchronous>, transform_indices = @transform_2, window_bounds = array<i64: 1, 8>}, {pipeline_mode = #tpu.pipeline_mode<synchronous>, transform_indices = @transform_3, window_bounds = array<i64: 8, 4>}, {pipeline_mode = #tpu.pipeline_mode<synchronous>, transform_indices = @transform_4, window_bounds = array<i64: 1, 4>}, {pipeline_mode = #tpu.pipeline_mode<synchronous>, transform_indices = @transform_5, window_bounds = array<i64: 1, 4>}, {transform_indices = @transform_6, window_bounds = array<i64: 256, 4>}]} {
    %c0 = arith.constant 0 : index
    %c0_0 = arith.constant 0 : index
    %0 = vector.load %arg1[%c0, %c0_0] : memref<256x8xf32, #tpu.memory_space<vmem>>, vector<256x8xf32>
    %c0_1 = arith.constant 0 : index
    %c0_2 = arith.constant 0 : index
    %1 = vector.load %arg2[%c0_1, %c0_2] : memref<1x8xf32, #tpu.memory_space<vmem>>, vector<1x8xf32>
    %2 = vector.broadcast %1 : vector<1x8xf32> to vector<256x8xf32>
    %3 = arith.mulf %0, %2 : vector<256x8xf32>
    %c0_3 = arith.constant 0 : index
    %c0_4 = arith.constant 0 : index
    %4 = vector.load %arg3[%c0_3, %c0_4] : memref<1x8xf32, #tpu.memory_space<vmem>>, vector<1x8xf32>
    %5 = vector.broadcast %4 : vector<1x8xf32> to vector<256x8xf32>
    %6 = arith.addf %3, %5 : vector<256x8xf32>
    %cst = arith.constant 0.000000e+00 : f32
    %7 = vector.broadcast %cst : f32 to vector<256x8xf32>
    %8 = arith.maximumf %6, %7 : vector<256x8xf32>
    %9 = arith.truncf %8 : vector<256x8xf32> to vector<256x8xbf16>
    %c0_5 = arith.constant 0 : index
    %c0_6 = arith.constant 0 : index
    %10 = vector.load %arg4[%c0_5, %c0_6] : memref<8x4xbf16, #tpu.memory_space<vmem>>, vector<8x4xbf16>
    %cst_7 = arith.constant dense<0.000000e+00> : vector<256x4xf32>
    %11 = tpu.matmul %9, %10, %cst_7 {dimension_numbers = #tpu.dot_dimension_numbers<[1], [0], [0], [1], [0, 0, 1, 1], [], []>} : vector<256x8xbf16>, vector<8x4xbf16>, vector<256x4xf32> -> vector<256x4xf32>
    %c0_8 = arith.constant 0 : index
    %c0_9 = arith.constant 0 : index
    %12 = vector.load %arg5[%c0_8, %c0_9] : memref<1x4xf32, #tpu.memory_space<vmem>>, vector<1x4xf32>
    %13 = vector.broadcast %12 : vector<1x4xf32> to vector<256x4xf32>
    %14 = arith.mulf %11, %13 : vector<256x4xf32>
    %c0_10 = arith.constant 0 : index
    %c0_11 = arith.constant 0 : index
    %15 = vector.load %arg6[%c0_10, %c0_11] : memref<1x4xf32, #tpu.memory_space<vmem>>, vector<1x4xf32>
    %16 = vector.broadcast %15 : vector<1x4xf32> to vector<256x4xf32>
    %17 = arith.addf %14, %16 : vector<256x4xf32>
    %cst_12 = arith.constant 0.000000e+00 : f32
    %18 = vector.broadcast %cst_12 : f32 to vector<256x4xf32>
    %19 = arith.maximumf %17, %18 : vector<256x4xf32>
    %20 = arith.truncf %19 : vector<256x4xf32> to vector<256x4xbf16>
    %c0_13 = arith.constant 0 : index
    %c0_14 = arith.constant 0 : index
    %21 = vector.load %arg7[%c0_13, %c0_14] : memref<256x4xbf16, #tpu.memory_space<vmem>>, vector<256x4xbf16>
    tpu.vector_store %arg7[%c0_13, %c0_14], %20 {strides = array<i32>} : memref<256x4xbf16, #tpu.memory_space<vmem>>, vector<256x4xbf16>,
    return
  }
  func.func @transform_0(%arg0: i32) -> (i32, i32) {
    %c0_i32 = arith.constant 0 : i32
    %c0_i32_0 = arith.constant 0 : i32
    return %arg0, %c0_i32 : i32, i32
  }
  func.func @transform_1(%arg0: i32) -> (i32, i32) {
    %c0_i32 = arith.constant 0 : i32
    %c0_i32_0 = arith.constant 0 : i32
    %c0_i32_1 = arith.constant 0 : i32
    return %c0_i32, %c0_i32_0 : i32, i32
  }
  func.func @transform_2(%arg0: i32) -> (i32, i32) {
    %c0_i32 = arith.constant 0 : i32
    %c0_i32_0 = arith.constant 0 : i32
    %c0_i32_1 = arith.constant 0 : i32
    return %c0_i32, %c0_i32_0 : i32, i32
  }
  func.func @transform_3(%arg0: i32) -> (i32, i32) {
    %c0_i32 = arith.constant 0 : i32
    %c0_i32_0 = arith.constant 0 : i32
    %c0_i32_1 = arith.constant 0 : i32
    return %c0_i32, %c0_i32_0 : i32, i32
  }
  func.func @transform_4(%arg0: i32) -> (i32, i32) {
    %c0_i32 = arith.constant 0 : i32
    %c0_i32_0 = arith.constant 0 : i32
    %c0_i32_1 = arith.constant 0 : i32
    return %c0_i32, %c0_i32_0 : i32, i32
  }
  func.func @transform_5(%arg0: i32) -> (i32, i32) {
    %c0_i32 = arith.constant 0 : i32
    %c0_i32_0 = arith.constant 0 : i32
    %c0_i32_1 = arith.constant 0 : i32
    return %c0_i32, %c0_i32_0 : i32, i32
  }
  func.func @transform_6(%arg0: i32) -> (i32, i32) {
    %c0_i32 = arith.constant 0 : i32
    %c0_i32_0 = arith.constant 0 : i32
    return %arg0, %c0_i32 : i32, i32
  }
}

</mosaic_0001>

<llo_original>
// kernel: tpu_custom_call.1
$region0: #{tpu_custom_call.1}
  #allocation0 [shape = 'u32[]', space=smem, size = 0x4, offset = 0x4, fixed_abs, tag = 'smem constant byte address 0x4 - core index']
  #allocation1 [shape = 'u32[144,128]{1,0:T(1,128)}', space=vmem, size = 0x12000, scoped, tag = 'internal scratch']
  %s0 = inlined_call_operand.vmem [shape: f32[512,8], index: 0, kind: input, shape index: {}]
  %s1 = inlined_call_operand.vmem [shape: f32[1,8], index: 1, kind: input, shape index: {}]
  %s2 = inlined_call_operand.vmem [shape: f32[1,8], index: 2, kind: input, shape index: {}]
  %s3 = inlined_call_operand.vmem [shape: bf16[8,4], index: 3, kind: input, shape index: {}]
  %s4 = inlined_call_operand.vmem [shape: f32[1,4], index: 4, kind: input, shape index: {}]
  %s5 = inlined_call_operand.vmem [shape: f32[1,4], index: 5, kind: input, shape index: {}]
  %s6 = inlined_call_operand.vmem [shape: bf16[512,4], index: 6, kind: output, shape index: {}]
  %s7 = sld [smem:[#allocation0]]
  $region57: #{tpu_custom_call.1} parent=0
    _
  %s9 = ssub.s32 1, %s7
  %s10 = scalar_select 0, %s9, %s7
  loop: start=0, step=1, limit=4
  $region2: #{tpu_custom_call.1} parent=0 // loop_pre_header
    _
  $region3: #{tpu_custom_call.1} parent=0 // loop_header
    %s12 = sphi 0, %s16
    %p13 = scmp.ge.s32.totalorder %s12, 4
    %s22 = sphi 0, %s24
    %s25 = sphi 0, %s22
    %s26 = sphi 0, %s25
    %s42 = sphi 0, %s26
    %s46 = sphi 0, %s46
    %s48 = sphi 0, %s46
    %s49 = sphi 0, %s48
    %s63 = sphi 0, %s49
    %s67 = sphi 0, %s67
    %s69 = sphi 0, %s67
    %s70 = sphi 0, %s69
    %s84 = sphi 0, %s70
    %s88 = sphi 0, %s88
    %s90 = sphi 0, %s88
    %s91 = sphi 0, %s90
    %s105 = sphi 0, %s91
    %s109 = sphi 0, %s109
    %s111 = sphi 0, %s109
    %s112 = sphi 0, %s111
    %s126 = sphi 0, %s112
    %s130 = sphi 0, %s130
    %s132 = sphi 0, %s130
    %s133 = sphi 0, %s132
    %s147 = sphi 0, %s133
    %s153 = sphi 0, %s155
    %s156 = sphi 0, %s153
    %s157 = sphi 0, %s156
    %s173 = sphi 0, %s157
  $region4: #{tpu_custom_call.1} parent=0 // loop_header_branch
    %15 = sbr.rel (%p13) target = $region8
  $region5: #{tpu_custom_call.1} parent=0 // loop_body
    %s17 = ssub.s32 %s12, 1
    %s18 = ssub.s32 %s12, 2
    %s19 = sadd.s32 %s12, 1
    %s20 = ssub.s32 %s12, %s19
    %p21 = scmp.eq.s32.totalorder %s20, 0
    %s23 = sadd.s32 %s22, 1
    %s24 = scalar_select %p21, %s22, %s23
    %p27 = pneg %p21
    %p28 = scmp.eq.s32.totalorder %s12, 1
    %p29 = por %p27, %p28
    %p30 = scmp.ne.s32.totalorder %s22, %s25
    %p31 = scmp.eq.s32.totalorder %s12, 0
    %p32 = por %p30, %p31
    %p33 = scmp.ne.s32.totalorder %s22, %s25
    %p34 = scmp.eq.s32.totalorder %s17, 1
    %p35 = por %p33, %p34
    %p36 = scmp.ne.s32.totalorder %s25, %s26
    %p37 = scmp.eq.s32.totalorder %s17, 0
    %p38 = por %p36, %p37
    %p39 = scmp.ne.s32.totalorder %s25, %s26
    %p40 = scmp.eq.s32.totalorder %s18, 1
    %p41 = por %p39, %p40
    %p43 = scmp.ne.s32.totalorder %s26, %s42
    %p44 = scmp.eq.s32.totalorder %s18, 0
    %p45 = por %p43, %p44
    %s47 = sadd.s32 %s46, 1
    %p50 = scmp.eq.s32.totalorder %s12, 1
    %p51 = scmp.ne.s32.totalorder %s46, %s48
    %p52 = scmp.eq.s32.totalorder %s12, 0
    %p53 = por %p51, %p52
    %p54 = scmp.ne.s32.totalorder %s46, %s48
    %p55 = scmp.eq.s32.totalorder %s17, 1
    %p56 = por %p54, %p55
    %p57 = scmp.ne.s32.totalorder %s48, %s49
    %p58 = scmp.eq.s32.totalorder %s17, 0
    %p59 = por %p57, %p58
    %p60 = scmp.ne.s32.totalorder %s48, %s49
    %p61 = scmp.eq.s32.totalorder %s18, 1
    %p62 = por %p60, %p61
    %p64 = scmp.ne.s32.totalorder %s49, %s63
    %p65 = scmp.eq.s32.totalorder %s18, 0
    %p66 = por %p64, %p65
    %s68 = sadd.s32 %s67, 1
    %p71 = scmp.eq.s32.totalorder %s12, 1
    %p72 = scmp.ne.s32.totalorder %s67, %s69
    %p73 = scmp.eq.s32.totalorder %s12, 0
    %p74 = por %p72, %p73
    %p75 = scmp.ne.s32.totalorder %s67, %s69
    %p76 = scmp.eq.s32.totalorder %s17, 1
    %p77 = por %p75, %p76
    %p78 = scmp.ne.s32.totalorder %s69, %s70
    %p79 = scmp.eq.s32.totalorder %s17, 0
    %p80 = por %p78, %p79
    %p81 = scmp.ne.s32.totalorder %s69, %s70
    %p82 = scmp.eq.s32.totalorder %s18, 1
    %p83 = por %p81, %p82
    %p85 = scmp.ne.s32.totalorder %s70, %s84
    %p86 = scmp.eq.s32.totalorder %s18, 0
    %p87 = por %p85, %p86
    %s89 = sadd.s32 %s88, 1
    %p92 = scmp.eq.s32.totalorder %s12, 1
    %p93 = scmp.ne.s32.totalorder %s88, %s90
    %p94 = scmp.eq.s32.totalorder %s12, 0
    %p95 = por %p93, %p94
    %p96 = scmp.ne.s32.totalorder %s88, %s90
    %p97 = scmp.eq.s32.totalorder %s17, 1
    %p98 = por %p96, %p97
    %p99 = scmp.ne.s32.totalorder %s90, %s91
    %p100 = scmp.eq.s32.totalorder %s17, 0
    %p101 = por %p99, %p100
    %p102 = scmp.ne.s32.totalorder %s90, %s91
    %p103 = scmp.eq.s32.totalorder %s18, 1
    %p104 = por %p102, %p103
    %p106 = scmp.ne.s32.totalorder %s91, %s105
    %p107 = scmp.eq.s32.totalorder %s18, 0
    %p108 = por %p106, %p107
    %s110 = sadd.s32 %s109, 1
    %p113 = scmp.eq.s32.totalorder %s12, 1
    %p114 = scmp.ne.s32.totalorder %s109, %s111
    %p115 = scmp.eq.s32.totalorder %s12, 0
    %p116 = por %p114, %p115
    %p117 = scmp.ne.s32.totalorder %s109, %s111
    %p118 = scmp.eq.s32.totalorder %s17, 1
    %p119 = por %p117, %p118
    %p120 = scmp.ne.s32.totalorder %s111, %s112
    %p121 = scmp.eq.s32.totalorder %s17, 0
    %p122 = por %p120, %p121
    %p123 = scmp.ne.s32.totalorder %s111, %s112
    %p124 = scmp.eq.s32.totalorder %s18, 1
    %p125 = por %p123, %p124
    %p127 = scmp.ne.s32.totalorder %s112, %s126
    %p128 = scmp.eq.s32.totalorder %s18, 0
    %p129 = por %p127, %p128
    %s131 = sadd.s32 %s130, 1
    %p134 = scmp.eq.s32.totalorder %s12, 1
    %p135 = scmp.ne.s32.totalorder %s130, %s132
    %p136 = scmp.eq.s32.totalorder %s12, 0
    %p137 = por %p135, %p136
    %p138 = scmp.ne.s32.totalorder %s130, %s132
    %p139 = scmp.eq.s32.totalorder %s17, 1
    %p140 = por %p138, %p139
    %p141 = scmp.ne.s32.totalorder %s132, %s133
    %p142 = scmp.eq.s32.totalorder %s17, 0
    %p143 = por %p141, %p142
    %p144 = scmp.ne.s32.totalorder %s132, %s133
    %p145 = scmp.eq.s32.totalorder %s18, 1
    %p146 = por %p144, %p145
    %p148 = scmp.ne.s32.totalorder %s133, %s147
    %p149 = scmp.eq.s32.totalorder %s18, 0
    %p150 = por %p148, %p149
    %s151 = ssub.s32 %s12, %s19
    %p152 = scmp.eq.s32.totalorder %s151, 0
    %s154 = sadd.s32 %s153, 1
    %s155 = scalar_select %p152, %s153, %s154
    %p158 = pneg %p152
    %p159 = scmp.eq.s32.totalorder %s12, 1
    %p160 = por %p158, %p159
    %p161 = scmp.ne.s32.totalorder %s153, %s156
    %p162 = scmp.eq.s32.totalorder %s12, 0
    %p163 = por %p161, %p162
    %p164 = scmp.ne.s32.totalorder %s153, %s156
    %p165 = scmp.eq.s32.totalorder %s17, 1
    %p166 = por %p164, %p165
    %p167 = scmp.ne.s32.totalorder %s156, %s157
    %p168 = scmp.eq.s32.totalorder %s17, 0
    %p169 = por %p167, %p168
    %p170 = scmp.ne.s32.totalorder %s156, %s157
    %p171 = scmp.eq.s32.totalorder %s18, 1
    %p172 = por %p170, %p171
    %p174 = scmp.ne.s32.totalorder %s157, %s173
    %p175 = scmp.eq.s32.totalorder %s18, 0
    %p176 = por %p174, %p175
    %p177 = scmp.le.s32.totalorder 1, %s12
    %p178 = scmp.lt.s32.totalorder %s12, 3
    %p179 = pnand %p177, %p178
    %p180 = pneg %p179
    // Predicated region
    $region9: #{tpu_custom_call.1} parent=5 // pred_check
      _
    $region10: #{tpu_custom_call.1} parent=5 // pred_check_branch
      %182 = sbr.rel (%p179) target = $region12
    $region11: #{tpu_custom_call.1} parent=5 // pred_region
      %s183 = ssub.s32 %s12, 1
      // Predicated region
      $region13: #{tpu_custom_call.1} parent=11 // pred_check
        %p184 = pneg %p59
      $region14: #{tpu_custom_call.1} parent=11 // pred_check_branch
        %186 = sbr.rel (%p184) target = $region16
      $region15: #{tpu_custom_call.1} parent=11 // pred_region
        _
      $region16: #{tpu_custom_call.1} parent=11 // pred_fallthru
        _
      // Predicated region
      $region17: #{tpu_custom_call.1} parent=11 // pred_check
        %p187 = pneg %p80
      $region18: #{tpu_custom_call.1} parent=11 // pred_check_branch
        %189 = sbr.rel (%p187) target = $region20
      $region19: #{tpu_custom_call.1} parent=11 // pred_region
        _
      $region20: #{tpu_custom_call.1} parent=11 // pred_fallthru
        _
      // Predicated region
      $region21: #{tpu_custom_call.1} parent=11 // pred_check
        %p190 = pneg %p101
      $region22: #{tpu_custom_call.1} parent=11 // pred_check_branch
        %192 = sbr.rel (%p190) target = $region24
      $region23: #{tpu_custom_call.1} parent=11 // pred_region
        _
      $region24: #{tpu_custom_call.1} parent=11 // pred_fallthru
        _
      // Predicated region
      $region25: #{tpu_custom_call.1} parent=11 // pred_check
        %p193 = pneg %p122
      $region26: #{tpu_custom_call.1} parent=11 // pred_check_branch
        %195 = sbr.rel (%p193) target = $region28
      $region27: #{tpu_custom_call.1} parent=11 // pred_region
        _
      $region28: #{tpu_custom_call.1} parent=11 // pred_fallthru
        _
      // Predicated region
      $region29: #{tpu_custom_call.1} parent=11 // pred_check
        %p196 = pneg %p143
      $region30: #{tpu_custom_call.1} parent=11 // pred_check_branch
        %198 = sbr.rel (%p196) target = $region32
      $region31: #{tpu_custom_call.1} parent=11 // pred_region
        _
      $region32: #{tpu_custom_call.1} parent=11 // pred_fallthru
        _
    $region12: #{tpu_custom_call.1} parent=5 // pred_fallthru
      _
    %p199 = scmp.lt.s32.totalorder %s12, 2
    // Predicated region
    $region33: #{tpu_custom_call.1} parent=5 // pred_check
      %p200 = pneg %p199
    $region34: #{tpu_custom_call.1} parent=5 // pred_check_branch
      %202 = sbr.rel (%p200) target = $region36
    $region35: #{tpu_custom_call.1} parent=5 // pred_region
      // Predicated region
      $region37: #{tpu_custom_call.1} parent=35 // pred_check
        %p203 = pneg %p32
      $region38: #{tpu_custom_call.1} parent=35 // pred_check_branch
        %205 = sbr.rel (%p203) target = $region40
      $region39: #{tpu_custom_call.1} parent=35 // pred_region
        %s206 = smul.u32 32, %s12
        %p207 = scmp.lt.s32.totalorder %s206, 63
        %s208 = scalar_select %p207, %s206, 63
        %s209 = smul.addr %s208, 8
        %s210 = scalar_lea.vmem %s0, %s209
        %s211 = smul.u32 32, %s12
      $region40: #{tpu_custom_call.1} parent=35 // pred_fallthru
        _
    $region36: #{tpu_custom_call.1} parent=5 // pred_fallthru
      _
    %p212 = scmp.le.s32.totalorder 1, %s12
    %p213 = scmp.lt.s32.totalorder %s12, 3
    %p214 = pnand %p212, %p213
    %p215 = pneg %p214
    // Predicated region
    $region41: #{tpu_custom_call.1} parent=5 // pred_check
      _
    $region42: #{tpu_custom_call.1} parent=5 // pred_check_branch
      %217 = sbr.rel (%p214) target = $region44
    $region43: #{tpu_custom_call.1} parent=5 // pred_region
      %s218 = ssub.s32 %s12, 1
      %s219 = smul.u32 32, %s17
      %p220 = scmp.lt.s32.totalorder %s219, 63
      %s221 = scalar_select %p220, %s219, 63
      %s222 = smul.addr %s221, 8
      %s223 = scalar_lea.vmem %s0, %s222
      %p224 = pneg %p38
      %p225 = pneg %p35
      %p226 = pneg %p59
      %p227 = pneg %p56
      %p228 = pneg %p80
      %p229 = pneg %p77
      %p230 = pneg %p101
      %p231 = pneg %p98
      %p232 = pneg %p122
      %p233 = pneg %p119
      %p234 = pneg %p143
      %p235 = pneg %p140
      %p236 = pneg %p169
      %p237 = pneg %p166
      %s238 = smul.u32 32, %s17
      %p239 = scmp.lt.s32.totalorder %s238, 63
      %s240 = scalar_select %p239, %s238, 63
      %s241 = smul.addr %s240, 4
      %s242 = scalar_lea.vmem %s6, %s241
      %s243 = smul.u32 32, %s17
      %p244 = scmp.lt.s32.totalorder %s243, 63
      %s245 = scalar_select %p244, %s243, 63
      %s246 = smul.addr %s245, 8
      %s247 = scalar_lea.vmem %s0, %s246
      %s248 = smul.u32 32, %s17
      %s249 = smul.u32 32, %s17
      %p250 = scmp.lt.s32.totalorder %s249, 63
      %s251 = scalar_select %p250, %s249, 63
      %s252 = smul.addr %s251, 4
      %s253 = scalar_lea.vmem %s6, %s252
      %s254 = smul.u32 32, %s17
      %v256 = vld [vmem:[%s247] sm:$0xff]
      %v257 = vld [vmem:[%s247 + $0x8] sm:$0xff]
      %v258 = vld [vmem:[%s247 + $0x10] sm:$0xff]
      %v259 = vld [vmem:[%s247 + $0x18] sm:$0xff]
      %v260 = vld [vmem:[%s247 + $0x20] sm:$0xff]
      %v261 = vld [vmem:[%s247 + $0x28] sm:$0xff]
      %v262 = vld [vmem:[%s247 + $0x30] sm:$0xff]
      %v263 = vld [vmem:[%s247 + $0x38] sm:$0xff]
      %v264 = vld [vmem:[%s247 + $0x40] sm:$0xff]
      %v265 = vld [vmem:[%s247 + $0x48] sm:$0xff]
      %v266 = vld [vmem:[%s247 + $0x50] sm:$0xff]
      %v267 = vld [vmem:[%s247 + $0x58] sm:$0xff]
      %v268 = vld [vmem:[%s247 + $0x60] sm:$0xff]
      %v269 = vld [vmem:[%s247 + $0x68] sm:$0xff]
      %v270 = vld [vmem:[%s247 + $0x70] sm:$0xff]
      %v271 = vld [vmem:[%s247 + $0x78] sm:$0xff]
      %v272 = vld [vmem:[%s247 + $0x80] sm:$0xff]
      %v273 = vld [vmem:[%s247 + $0x88] sm:$0xff]
      %v274 = vld [vmem:[%s247 + $0x90] sm:$0xff]
      %v275 = vld [vmem:[%s247 + $0x98] sm:$0xff]
      %v276 = vld [vmem:[%s247 + $0xa0] sm:$0xff]
      %v277 = vld [vmem:[%s247 + $0xa8] sm:$0xff]
      %v278 = vld [vmem:[%s247 + $0xb0] sm:$0xff]
      %v279 = vld [vmem:[%s247 + $0xb8] sm:$0xff]
      %v280 = vld [vmem:[%s247 + $0xc0] sm:$0xff]
      %v281 = vld [vmem:[%s247 + $0xc8] sm:$0xff]
      %v282 = vld [vmem:[%s247 + $0xd0] sm:$0xff]
      %v283 = vld [vmem:[%s247 + $0xd8] sm:$0xff]
      %v284 = vld [vmem:[%s247 + $0xe0] sm:$0xff]
      %v285 = vld [vmem:[%s247 + $0xe8] sm:$0xff]
      %v286 = vld [vmem:[%s247 + $0xf0] sm:$0xff]
      %v287 = vld [vmem:[%s247 + $0xf8] sm:$0xff]
      %v288 = vld [vmem:[%s1] sm:$0x1]
      %v290 = vlaneseq
      %v291 = vshrl.u32 %v290, 7
      %v292 = vsub.s32 0, %v291
      %v293 = vrot.slane %v288, %v292
      %v295 = vmul.f32 %v256, %v293
      %v296 = vmul.f32 %v257, %v293
      %v297 = vmul.f32 %v258, %v293
      %v298 = vmul.f32 %v259, %v293
      %v299 = vmul.f32 %v260, %v293
      %v300 = vmul.f32 %v261, %v293
      %v301 = vmul.f32 %v262, %v293
      %v302 = vmul.f32 %v263, %v293
      %v303 = vmul.f32 %v264, %v293
      %v304 = vmul.f32 %v265, %v293
      %v305 = vmul.f32 %v266, %v293
      %v306 = vmul.f32 %v267, %v293
      %v307 = vmul.f32 %v268, %v293
      %v308 = vmul.f32 %v269, %v293
      %v309 = vmul.f32 %v270, %v293
      %v310 = vmul.f32 %v271, %v293
      %v311 = vmul.f32 %v272, %v293
      %v312 = vmul.f32 %v273, %v293
      %v313 = vmul.f32 %v274, %v293
      %v314 = vmul.f32 %v275, %v293
      %v315 = vmul.f32 %v276, %v293
      %v316 = vmul.f32 %v277, %v293
      %v317 = vmul.f32 %v278, %v293
      %v318 = vmul.f32 %v279, %v293
      %v319 = vmul.f32 %v280, %v293
      %v320 = vmul.f32 %v281, %v293
      %v321 = vmul.f32 %v282, %v293
      %v322 = vmul.f32 %v283, %v293
      %v323 = vmul.f32 %v284, %v293
      %v324 = vmul.f32 %v285, %v293
      %v325 = vmul.f32 %v286, %v293
      %v326 = vmul.f32 %v287, %v293
      %v327 = vld [vmem:[%s2] sm:$0x1]
      %v329 = vlaneseq
      %v330 = vshrl.u32 %v329, 7
      %v331 = vsub.s32 0, %v330
      %v332 = vrot.slane %v327, %v331
      %v334 = vadd.f32 %v295, %v332
      %v335 = vadd.f32 %v296, %v332
      %v336 = vadd.f32 %v297, %v332
      %v337 = vadd.f32 %v298, %v332
      %v338 = vadd.f32 %v299, %v332
      %v339 = vadd.f32 %v300, %v332
      %v340 = vadd.f32 %v301, %v332
      %v341 = vadd.f32 %v302, %v332
      %v342 = vadd.f32 %v303, %v332
      %v343 = vadd.f32 %v304, %v332
      %v344 = vadd.f32 %v305, %v332
      %v345 = vadd.f32 %v306, %v332
      %v346 = vadd.f32 %v307, %v332
      %v347 = vadd.f32 %v308, %v332
      %v348 = vadd.f32 %v309, %v332
      %v349 = vadd.f32 %v310, %v332
      %v350 = vadd.f32 %v311, %v332
      %v351 = vadd.f32 %v312, %v332
      %v352 = vadd.f32 %v313, %v332
      %v353 = vadd.f32 %v314, %v332
      %v354 = vadd.f32 %v315, %v332
      %v355 = vadd.f32 %v316, %v332
      %v356 = vadd.f32 %v317, %v332
      %v357 = vadd.f32 %v318, %v332
      %v358 = vadd.f32 %v319, %v332
      %v359 = vadd.f32 %v320, %v332
      %v360 = vadd.f32 %v321, %v332
      %v361 = vadd.f32 %v322, %v332
      %v362 = vadd.f32 %v323, %v332
      %v363 = vadd.f32 %v324, %v332
      %v364 = vadd.f32 %v325, %v332
      %v365 = vadd.f32 %v326, %v332
      %v366 = vmax.f32 %v334, 0.0
      %v367 = vmax.f32 %v335, 0.0
      %v368 = vmax.f32 %v336, 0.0
      %v369 = vmax.f32 %v337, 0.0
      %v370 = vmax.f32 %v338, 0.0
      %v371 = vmax.f32 %v339, 0.0
      %v372 = vmax.f32 %v340, 0.0
      %v373 = vmax.f32 %v341, 0.0
      %v374 = vmax.f32 %v342, 0.0
      %v375 = vmax.f32 %v343, 0.0
      %v376 = vmax.f32 %v344, 0.0
      %v377 = vmax.f32 %v345, 0.0
      %v378 = vmax.f32 %v346, 0.0
      %v379 = vmax.f32 %v347, 0.0
      %v380 = vmax.f32 %v348, 0.0
      %v381 = vmax.f32 %v349, 0.0
      %v382 = vmax.f32 %v350, 0.0
      %v383 = vmax.f32 %v351, 0.0
      %v384 = vmax.f32 %v352, 0.0
      %v385 = vmax.f32 %v353, 0.0
      %v386 = vmax.f32 %v354, 0.0
      %v387 = vmax.f32 %v355, 0.0
      %v388 = vmax.f32 %v356, 0.0
      %v389 = vmax.f32 %v357, 0.0
      %v390 = vmax.f32 %v358, 0.0
      %v391 = vmax.f32 %v359, 0.0
      %v392 = vmax.f32 %v360, 0.0
      %v393 = vmax.f32 %v361, 0.0
      %v394 = vmax.f32 %v362, 0.0
      %v395 = vmax.f32 %v363, 0.0
      %v396 = vmax.f32 %v364, 0.0
      %v397 = vmax.f32 %v365, 0.0
      %v398 = vpack.c.bf16 %v367, %v366
      %v399 = vpack.c.bf16 %v369, %v368
      %v400 = vpack.c.bf16 %v371, %v370
      %v401 = vpack.c.bf16 %v373, %v372
      %v402 = vpack.c.bf16 %v375, %v374
      %v403 = vpack.c.bf16 %v377, %v376
      %v404 = vpack.c.bf16 %v379, %v378
      %v405 = vpack.c.bf16 %v381, %v380
      %v406 = vpack.c.bf16 %v383, %v382
      %v407 = vpack.c.bf16 %v385, %v384
      %v408 = vpack.c.bf16 %v387, %v386
      %v409 = vpack.c.bf16 %v389, %v388
      %v410 = vpack.c.bf16 %v391, %v390
      %v411 = vpack.c.bf16 %v393, %v392
      %v412 = vpack.c.bf16 %v395, %v394
      %v413 = vpack.c.bf16 %v397, %v396
      %v414 = vld [vmem:[%s3] sm:$0xf]
      %vm415 = vcmask 64512
      %v417 = vsel %vm415, %v398, 0
      %v420 = vsel %vm415, %v399, 0
      %v423 = vsel %vm415, %v400, 0
      %v426 = vsel %vm415, %v401, 0
      %v429 = vsel %vm415, %v402, 0
      %v432 = vsel %vm415, %v403, 0
      %v435 = vsel %vm415, %v404, 0
      %v438 = vsel %vm415, %v405, 0
      %v441 = vsel %vm415, %v406, 0
      %v444 = vsel %vm415, %v407, 0
      %v447 = vsel %vm415, %v408, 0
      %v450 = vsel %vm415, %v409, 0
      %v453 = vsel %vm415, %v410, 0
      %v456 = vsel %vm415, %v411, 0
      %v459 = vsel %vm415, %v412, 0
      %v462 = vsel %vm415, %v413, 0
      %vm464 = vcmask 1043456
      %v466 = vsel %vm464, %v414, 0
      %468 = vmatprep.subr.bf16.mxu0 0
      %469 = vmatpush1.bf16.msra.mxu0 0
      %470 = vmatprep.subr.bf16.mxu0 0
      %471 = vmatpush1.bf16.msra.mxu0 0
      %472 = vmatprep.subr.bf16.mxu0 0
      %473 = vmatpush1.bf16.msra.mxu0 0
      %474 = vmatprep.subr.bf16.mxu0 0
      %475 = vmatpush1.bf16.msra.mxu0 0
      %476 = vmatprep.subr.bf16.mxu0 0
      %477 = vmatpush1.bf16.msra.mxu0 0
      %478 = vmatprep.subr.bf16.mxu0 0
      %479 = vmatpush1.bf16.msra.mxu0 0
      %480 = vmatprep.subr.bf16.mxu0 0
      %481 = vmatpush1.bf16.msra.mxu0 0
      %482 = vmatprep.subr.bf16.mxu0 0
      %483 = vmatpush1.bf16.msra.mxu0 %v466
      %484 = vmatprep.subr.bf16.mxu0 0
      %485 = vmatpush2.bf16.msra.mxu0 0
      %486 = vmatprep.subr.bf16.mxu0 0
      %487 = vmatpush2.bf16.msra.mxu0 0
      %488 = vmatprep.subr.bf16.mxu0 0
      %489 = vmatpush2.bf16.msra.mxu0 0
      %490 = vmatprep.subr.bf16.mxu0 0
      %491 = vmatpush2.bf16.msra.mxu0 0
      %492 = vmatprep.subr.bf16.mxu0 0
      %493 = vmatpush2.bf16.msra.mxu0 0
      %494 = vmatprep.subr.bf16.mxu0 0
      %495 = vmatpush2.bf16.msra.mxu0 0
      %496 = vmatprep.subr.bf16.mxu0 0
      %497 = vmatpush2.bf16.msra.mxu0 0
      %498 = vmatprep.subr.bf16.mxu0 0
      %499 = vmatpush2.bf16.msra.mxu0 0
      %500 = vmatprep.mubr.bf16.mxu0 0
      %501 = vmatmul.mubr.bf16.gmra.mxu0 %v417
      %v502 = vpop.f32.mrf.mxu0
      %v503 = vadd.f32 0.0, %v502
      %v504 = vpop.f32.mrf.mxu0
      %v505 = vpop.f32.mrf.mxu0
      %v506 = vadd.f32 0.0, %v505
      %v507 = vpop.f32.mrf.mxu0
      %508 = vmatprep.mubr.bf16.mxu0 0
      %509 = vmatmul.mubr.bf16.gmra.mxu0 %v420
      %v510 = vpop.f32.mrf.mxu0
      %v511 = vadd.f32 0.0, %v510
      %v512 = vpop.f32.mrf.mxu0
      %v513 = vpop.f32.mrf.mxu0
      %v514 = vadd.f32 0.0, %v513
      %v515 = vpop.f32.mrf.mxu0
      %516 = vmatprep.mubr.bf16.mxu0 0
      %517 = vmatmul.mubr.bf16.gmra.mxu0 %v423
      %v518 = vpop.f32.mrf.mxu0
      %v519 = vadd.f32 0.0, %v518
      %v520 = vpop.f32.mrf.mxu0
      %v521 = vpop.f32.mrf.mxu0
      %v522 = vadd.f32 0.0, %v521
      %v523 = vpop.f32.mrf.mxu0
      %524 = vmatprep.mubr.bf16.mxu0 0
      %525 = vmatmul.mubr.bf16.gmra.mxu0 %v426
      %v526 = vpop.f32.mrf.mxu0
      %v527 = vadd.f32 0.0, %v526
      %v528 = vpop.f32.mrf.mxu0
      %v529 = vpop.f32.mrf.mxu0
      %v530 = vadd.f32 0.0, %v529
      %v531 = vpop.f32.mrf.mxu0
      %532 = vmatprep.mubr.bf16.mxu0 0
      %533 = vmatmul.mubr.bf16.gmra.mxu0 %v429
      %v534 = vpop.f32.mrf.mxu0
      %v535 = vadd.f32 0.0, %v534
      %v536 = vpop.f32.mrf.mxu0
      %v537 = vpop.f32.mrf.mxu0
      %v538 = vadd.f32 0.0, %v537
      %v539 = vpop.f32.mrf.mxu0
      %540 = vmatprep.mubr.bf16.mxu0 0
      %541 = vmatmul.mubr.bf16.gmra.mxu0 %v432
      %v542 = vpop.f32.mrf.mxu0
      %v543 = vadd.f32 0.0, %v542
      %v544 = vpop.f32.mrf.mxu0
      %v545 = vpop.f32.mrf.mxu0
      %v546 = vadd.f32 0.0, %v545
      %v547 = vpop.f32.mrf.mxu0
      %548 = vmatprep.mubr.bf16.mxu0 0
      %549 = vmatmul.mubr.bf16.gmra.mxu0 %v435
      %v550 = vpop.f32.mrf.mxu0
      %v551 = vadd.f32 0.0, %v550
      %v552 = vpop.f32.mrf.mxu0
      %v553 = vpop.f32.mrf.mxu0
      %v554 = vadd.f32 0.0, %v553
      %v555 = vpop.f32.mrf.mxu0
      %556 = vmatprep.mubr.bf16.mxu0 0
      %557 = vmatmul.mubr.bf16.gmra.mxu0 %v438
      %v558 = vpop.f32.mrf.mxu0
      %v559 = vadd.f32 0.0, %v558
      %v560 = vpop.f32.mrf.mxu0
      %v561 = vpop.f32.mrf.mxu0
      %v562 = vadd.f32 0.0, %v561
      %v563 = vpop.f32.mrf.mxu0
      %564 = vmatprep.mubr.bf16.mxu0 0
      %565 = vmatmul.mubr.bf16.gmra.mxu0 %v441
      %v566 = vpop.f32.mrf.mxu0
      %v567 = vadd.f32 0.0, %v566
      %v568 = vpop.f32.mrf.mxu0
      %v569 = vpop.f32.mrf.mxu0
      %v570 = vadd.f32 0.0, %v569
      %v571 = vpop.f32.mrf.mxu0
      %572 = vmatprep.mubr.bf16.mxu0 0
      %573 = vmatmul.mubr.bf16.gmra.mxu0 %v444
      %v574 = vpop.f32.mrf.mxu0
      %v575 = vadd.f32 0.0, %v574
      %v576 = vpop.f32.mrf.mxu0
      %v577 = vpop.f32.mrf.mxu0
      %v578 = vadd.f32 0.0, %v577
      %v579 = vpop.f32.mrf.mxu0
      %580 = vmatprep.mubr.bf16.mxu0 0
      %581 = vmatmul.mubr.bf16.gmra.mxu0 %v447
      %v582 = vpop.f32.mrf.mxu0
      %v583 = vadd.f32 0.0, %v582
      %v584 = vpop.f32.mrf.mxu0
      %v585 = vpop.f32.mrf.mxu0
      %v586 = vadd.f32 0.0, %v585
      %v587 = vpop.f32.mrf.mxu0
      %588 = vmatprep.mubr.bf16.mxu0 0
      %589 = vmatmul.mubr.bf16.gmra.mxu0 %v450
      %v590 = vpop.f32.mrf.mxu0
      %v591 = vadd.f32 0.0, %v590
      %v592 = vpop.f32.mrf.mxu0
      %v593 = vpop.f32.mrf.mxu0
      %v594 = vadd.f32 0.0, %v593
      %v595 = vpop.f32.mrf.mxu0
      %596 = vmatprep.mubr.bf16.mxu0 0
      %597 = vmatmul.mubr.bf16.gmra.mxu0 %v453
      %v598 = vpop.f32.mrf.mxu0
      %v599 = vadd.f32 0.0, %v598
      %v600 = vpop.f32.mrf.mxu0
      %v601 = vpop.f32.mrf.mxu0
      %v602 = vadd.f32 0.0, %v601
      %v603 = vpop.f32.mrf.mxu0
      %604 = vmatprep.mubr.bf16.mxu0 0
      %605 = vmatmul.mubr.bf16.gmra.mxu0 %v456
      %v606 = vpop.f32.mrf.mxu0
      %v607 = vadd.f32 0.0, %v606
      %v608 = vpop.f32.mrf.mxu0
      %v609 = vpop.f32.mrf.mxu0
      %v610 = vadd.f32 0.0, %v609
      %v611 = vpop.f32.mrf.mxu0
      %612 = vmatprep.mubr.bf16.mxu0 0
      %613 = vmatmul.mubr.bf16.gmra.mxu0 %v459
      %v614 = vpop.f32.mrf.mxu0
      %v615 = vadd.f32 0.0, %v614
      %v616 = vpop.f32.mrf.mxu0
      %v617 = vpop.f32.mrf.mxu0
      %v618 = vadd.f32 0.0, %v617
      %v619 = vpop.f32.mrf.mxu0
      %620 = vmatprep.mubr.bf16.mxu0 0
      %621 = vmatmul.mubr.bf16.gmra.mxu0 %v462
      %v622 = vpop.f32.mrf.mxu0
      %v623 = vadd.f32 0.0, %v622
      %v624 = vpop.f32.mrf.mxu0
      %v625 = vpop.f32.mrf.mxu0
      %v626 = vadd.f32 0.0, %v625
      %v627 = vpop.f32.mrf.mxu0
      %628 = vdwg.mxu0
      %v629 = vld [vmem:[%s4] sm:$0x1]
      %v631 = vlaneseq
      %v632 = vshrl.u32 %v631, 7
      %v633 = vsub.s32 0, %v632
      %v634 = vrot.slane %v629, %v633
      %v636 = vmul.f32 %v503, %v634
      %v637 = vmul.f32 %v506, %v634
      %v638 = vmul.f32 %v511, %v634
      %v639 = vmul.f32 %v514, %v634
      %v640 = vmul.f32 %v519, %v634
      %v641 = vmul.f32 %v522, %v634
      %v642 = vmul.f32 %v527, %v634
      %v643 = vmul.f32 %v530, %v634
      %v644 = vmul.f32 %v535, %v634
      %v645 = vmul.f32 %v538, %v634
      %v646 = vmul.f32 %v543, %v634
      %v647 = vmul.f32 %v546, %v634
      %v648 = vmul.f32 %v551, %v634
      %v649 = vmul.f32 %v554, %v634
      %v650 = vmul.f32 %v559, %v634
      %v651 = vmul.f32 %v562, %v634
      %v652 = vmul.f32 %v567, %v634
      %v653 = vmul.f32 %v570, %v634
      %v654 = vmul.f32 %v575, %v634
      %v655 = vmul.f32 %v578, %v634
      %v656 = vmul.f32 %v583, %v634
      %v657 = vmul.f32 %v586, %v634
      %v658 = vmul.f32 %v591, %v634
      %v659 = vmul.f32 %v594, %v634
      %v660 = vmul.f32 %v599, %v634
      %v661 = vmul.f32 %v602, %v634
      %v662 = vmul.f32 %v607, %v634
      %v663 = vmul.f32 %v610, %v634
      %v664 = vmul.f32 %v615, %v634
      %v665 = vmul.f32 %v618, %v634
      %v666 = vmul.f32 %v623, %v634
      %v667 = vmul.f32 %v626, %v634
      %v668 = vld [vmem:[%s5] sm:$0x1]
      %v670 = vlaneseq
      %v671 = vshrl.u32 %v670, 7
      %v672 = vsub.s32 0, %v671
      %v673 = vrot.slane %v668, %v672
      %v675 = vadd.f32 %v636, %v673
      %v676 = vadd.f32 %v637, %v673
      %v677 = vadd.f32 %v638, %v673
      %v678 = vadd.f32 %v639, %v673
      %v679 = vadd.f32 %v640, %v673
      %v680 = vadd.f32 %v641, %v673
      %v681 = vadd.f32 %v642, %v673
      %v682 = vadd.f32 %v643, %v673
      %v683 = vadd.f32 %v644, %v673
      %v684 = vadd.f32 %v645, %v673
      %v685 = vadd.f32 %v646, %v673
      %v686 = vadd.f32 %v647, %v673
      %v687 = vadd.f32 %v648, %v673
      %v688 = vadd.f32 %v649, %v673
      %v689 = vadd.f32 %v650, %v673
      %v690 = vadd.f32 %v651, %v673
      %v691 = vadd.f32 %v652, %v673
      %v692 = vadd.f32 %v653, %v673
      %v693 = vadd.f32 %v654, %v673
      %v694 = vadd.f32 %v655, %v673
      %v695 = vadd.f32 %v656, %v673
      %v696 = vadd.f32 %v657, %v673
      %v697 = vadd.f32 %v658, %v673
      %v698 = vadd.f32 %v659, %v673
      %v699 = vadd.f32 %v660, %v673
      %v700 = vadd.f32 %v661, %v673
      %v701 = vadd.f32 %v662, %v673
      %v702 = vadd.f32 %v663, %v673
      %v703 = vadd.f32 %v664, %v673
      %v704 = vadd.f32 %v665, %v673
      %v705 = vadd.f32 %v666, %v673
      %v706 = vadd.f32 %v667, %v673
      %v707 = vmax.f32 %v675, 0.0
      %v708 = vmax.f32 %v676, 0.0
      %v709 = vmax.f32 %v677, 0.0
      %v710 = vmax.f32 %v678, 0.0
      %v711 = vmax.f32 %v679, 0.0
      %v712 = vmax.f32 %v680, 0.0
      %v713 = vmax.f32 %v681, 0.0
      %v714 = vmax.f32 %v682, 0.0
      %v715 = vmax.f32 %v683, 0.0
      %v716 = vmax.f32 %v684, 0.0
      %v717 = vmax.f32 %v685, 0.0
      %v718 = vmax.f32 %v686, 0.0
      %v719 = vmax.f32 %v687, 0.0
      %v720 = vmax.f32 %v688, 0.0
      %v721 = vmax.f32 %v689, 0.0
      %v722 = vmax.f32 %v690, 0.0
      %v723 = vmax.f32 %v691, 0.0
      %v724 = vmax.f32 %v692, 0.0
      %v725 = vmax.f32 %v693, 0.0
      %v726 = vmax.f32 %v694, 0.0
      %v727 = vmax.f32 %v695, 0.0
      %v728 = vmax.f32 %v696, 0.0
      %v729 = vmax.f32 %v697, 0.0
      %v730 = vmax.f32 %v698, 0.0
      %v731 = vmax.f32 %v699, 0.0
      %v732 = vmax.f32 %v700, 0.0
      %v733 = vmax.f32 %v701, 0.0
      %v734 = vmax.f32 %v702, 0.0
      %v735 = vmax.f32 %v703, 0.0
      %v736 = vmax.f32 %v704, 0.0
      %v737 = vmax.f32 %v705, 0.0
      %v738 = vmax.f32 %v706, 0.0
      %v739 = vpack.c.bf16 %v708, %v707
      %v740 = vpack.c.bf16 %v710, %v709
      %v741 = vpack.c.bf16 %v712, %v711
      %v742 = vpack.c.bf16 %v714, %v713
      %v743 = vpack.c.bf16 %v716, %v715
      %v744 = vpack.c.bf16 %v718, %v717
      %v745 = vpack.c.bf16 %v720, %v719
      %v746 = vpack.c.bf16 %v722, %v721
      %v747 = vpack.c.bf16 %v724, %v723
      %v748 = vpack.c.bf16 %v726, %v725
      %v749 = vpack.c.bf16 %v728, %v727
      %v750 = vpack.c.bf16 %v730, %v729
      %v751 = vpack.c.bf16 %v732, %v731
      %v752 = vpack.c.bf16 %v734, %v733
      %v753 = vpack.c.bf16 %v736, %v735
      %v754 = vpack.c.bf16 %v738, %v737
      %v771 = vunpack.c.l.b16 %v739
      %v772 = vunpack.c.h.b16 %v739
      %v773 = vunpack.c.l.b16 %v740
      %v774 = vunpack.c.h.b16 %v740
      %v775 = vunpack.c.l.b16 %v741
      %v776 = vunpack.c.h.b16 %v741
      %v777 = vunpack.c.l.b16 %v742
      %v778 = vunpack.c.h.b16 %v742
      %v779 = vunpack.c.l.b16 %v743
      %v780 = vunpack.c.h.b16 %v743
      %v781 = vunpack.c.l.b16 %v744
      %v782 = vunpack.c.h.b16 %v744
      %v783 = vunpack.c.l.b16 %v745
      %v784 = vunpack.c.h.b16 %v745
      %v785 = vunpack.c.l.b16 %v746
      %v786 = vunpack.c.h.b16 %v746
      %v787 = vunpack.c.l.b16 %v747
      %v788 = vunpack.c.h.b16 %v747
      %v789 = vunpack.c.l.b16 %v748
      %v790 = vunpack.c.h.b16 %v748
      %v791 = vunpack.c.l.b16 %v749
      %v792 = vunpack.c.h.b16 %v749
      %v793 = vunpack.c.l.b16 %v750
      %v794 = vunpack.c.h.b16 %v750
      %v795 = vunpack.c.l.b16 %v751
      %v796 = vunpack.c.h.b16 %v751
      %v797 = vunpack.c.l.b16 %v752
      %v798 = vunpack.c.h.b16 %v752
      %v799 = vunpack.c.l.b16 %v753
      %v800 = vunpack.c.h.b16 %v753
      %v801 = vunpack.c.l.b16 %v754
      %v802 = vunpack.c.h.b16 %v754
      %v803 = vpack.c.b16 %v771, %v771
      %v804 = vpack.c.b16 %v772, %v772
      %v805 = vpack.c.b16 %v773, %v773
      %v806 = vpack.c.b16 %v774, %v774
      %v807 = vpack.c.b16 %v775, %v775
      %v808 = vpack.c.b16 %v776, %v776
      %v809 = vpack.c.b16 %v777, %v777
      %v810 = vpack.c.b16 %v778, %v778
      %v811 = vpack.c.b16 %v779, %v779
      %v812 = vpack.c.b16 %v780, %v780
      %v813 = vpack.c.b16 %v781, %v781
      %v814 = vpack.c.b16 %v782, %v782
      %v815 = vpack.c.b16 %v783, %v783
      %v816 = vpack.c.b16 %v784, %v784
      %v817 = vpack.c.b16 %v785, %v785
      %v818 = vpack.c.b16 %v786, %v786
      %v819 = vpack.c.b16 %v787, %v787
      %v820 = vpack.c.b16 %v788, %v788
      %v821 = vpack.c.b16 %v789, %v789
      %v822 = vpack.c.b16 %v790, %v790
      %v823 = vpack.c.b16 %v791, %v791
      %v824 = vpack.c.b16 %v792, %v792
      %v825 = vpack.c.b16 %v793, %v793
      %v826 = vpack.c.b16 %v794, %v794
      %v827 = vpack.c.b16 %v795, %v795
      %v828 = vpack.c.b16 %v796, %v796
      %v829 = vpack.c.b16 %v797, %v797
      %v830 = vpack.c.b16 %v798, %v798
      %v831 = vpack.c.b16 %v799, %v799
      %v832 = vpack.c.b16 %v800, %v800
      %v833 = vpack.c.b16 %v801, %v801
      %v834 = vpack.c.b16 %v802, %v802
      %vm867 = vcmask 27648
      %868 = vst.msk [vmem:[%s253] sm:$0xf] %vm867, %v803
      %869 = vst.msk [vmem:[%s253 + $0x4] sm:$0xf] %vm867, %v804
      %870 = vst.msk [vmem:[%s253 + $0x8] sm:$0xf] %vm867, %v805
      %871 = vst.msk [vmem:[%s253 + $0xc] sm:$0xf] %vm867, %v806
      %872 = vst.msk [vmem:[%s253 + $0x10] sm:$0xf] %vm867, %v807
      %873 = vst.msk [vmem:[%s253 + $0x14] sm:$0xf] %vm867, %v808
      %874 = vst.msk [vmem:[%s253 + $0x18] sm:$0xf] %vm867, %v809
      %875 = vst.msk [vmem:[%s253 + $0x1c] sm:$0xf] %vm867, %v810
      %876 = vst.msk [vmem:[%s253 + $0x20] sm:$0xf] %vm867, %v811
      %877 = vst.msk [vmem:[%s253 + $0x24] sm:$0xf] %vm867, %v812
      %878 = vst.msk [vmem:[%s253 + $0x28] sm:$0xf] %vm867, %v813
      %879 = vst.msk [vmem:[%s253 + $0x2c] sm:$0xf] %vm867, %v814
      %880 = vst.msk [vmem:[%s253 + $0x30] sm:$0xf] %vm867, %v815
      %881 = vst.msk [vmem:[%s253 + $0x34] sm:$0xf] %vm867, %v816
      %882 = vst.msk [vmem:[%s253 + $0x38] sm:$0xf] %vm867, %v817
      %883 = vst.msk [vmem:[%s253 + $0x3c] sm:$0xf] %vm867, %v818
      %884 = vst.msk [vmem:[%s253 + $0x40] sm:$0xf] %vm867, %v819
      %885 = vst.msk [vmem:[%s253 + $0x44] sm:$0xf] %vm867, %v820
      %886 = vst.msk [vmem:[%s253 + $0x48] sm:$0xf] %vm867, %v821
      %887 = vst.msk [vmem:[%s253 + $0x4c] sm:$0xf] %vm867, %v822
      %888 = vst.msk [vmem:[%s253 + $0x50] sm:$0xf] %vm867, %v823
      %889 = vst.msk [vmem:[%s253 + $0x54] sm:$0xf] %vm867, %v824
      %890 = vst.msk [vmem:[%s253 + $0x58] sm:$0xf] %vm867, %v825
      %891 = vst.msk [vmem:[%s253 + $0x5c] sm:$0xf] %vm867, %v826
      %892 = vst.msk [vmem:[%s253 + $0x60] sm:$0xf] %vm867, %v827
      %893 = vst.msk [vmem:[%s253 + $0x64] sm:$0xf] %vm867, %v828
      %894 = vst.msk [vmem:[%s253 + $0x68] sm:$0xf] %vm867, %v829
      %895 = vst.msk [vmem:[%s253 + $0x6c] sm:$0xf] %vm867, %v830
      %896 = vst.msk [vmem:[%s253 + $0x70] sm:$0xf] %vm867, %v831
      %897 = vst.msk [vmem:[%s253 + $0x74] sm:$0xf] %vm867, %v832
      %898 = vst.msk [vmem:[%s253 + $0x78] sm:$0xf] %vm867, %v833
      %899 = vst.msk [vmem:[%s253 + $0x7c] sm:$0xf] %vm867, %v834
      %s900 = smul.u32 32, %s17
      %p901 = scmp.lt.s32.totalorder %s900, 63
      %s902 = scalar_select %p901, %s900, 63
      %s903 = smul.addr %s902, 4
      %s904 = scalar_lea.vmem %s6, %s903
      // Predicated region
      $region45: #{tpu_custom_call.1} parent=43 // pred_check
        %p905 = pneg %p166
      $region46: #{tpu_custom_call.1} parent=43 // pred_check_branch
        %907 = sbr.rel (%p905) target = $region48
      $region47: #{tpu_custom_call.1} parent=43 // pred_region
        %s908 = smul.u32 32, %s17
      $region48: #{tpu_custom_call.1} parent=43 // pred_fallthru
        _
    $region44: #{tpu_custom_call.1} parent=5 // pred_fallthru
      _
    %p909 = scmp.le.s32.totalorder 2, %s12
    // Predicated region
    $region49: #{tpu_custom_call.1} parent=5 // pred_check
      %p910 = pneg %p909
    $region50: #{tpu_custom_call.1} parent=5 // pred_check_branch
      %912 = sbr.rel (%p910) target = $region52
    $region51: #{tpu_custom_call.1} parent=5 // pred_region
      %s913 = ssub.s32 %s12, 2
      // Predicated region
      $region53: #{tpu_custom_call.1} parent=51 // pred_check
        %p914 = pneg %p172
      $region54: #{tpu_custom_call.1} parent=51 // pred_check_branch
        %916 = sbr.rel (%p914) target = $region56
      $region55: #{tpu_custom_call.1} parent=51 // pred_region
        %s917 = smul.u32 32, %s18
        %p918 = scmp.lt.s32.totalorder %s917, 63
        %s919 = scalar_select %p918, %s917, 63
        %s920 = smul.addr %s919, 4
        %s921 = scalar_lea.vmem %s6, %s920
      $region56: #{tpu_custom_call.1} parent=51 // pred_fallthru
        _
    $region52: #{tpu_custom_call.1} parent=5 // pred_fallthru
      _
  $region6: #{tpu_custom_call.1} parent=0 // loop_footer
    %s16 = sadd.s32 1, %s12
  $region7: #{tpu_custom_call.1} parent=0 // loop_footer_branch
    %11 = sbr.rel target = $region3
  $region8: #{tpu_custom_call.1} parent=0 // loop_exit
    _

</llo_original>
